<compile_context>
chip_gen: v7x
topology: tpu7x:2x2x1
jax: 0.10.0
libtpu: 0.0.40
codegen_flags: <defaults>
</compile_context>

<pallas_src>
import functools
import math

import jax
import jax.numpy as jnp
from jax import lax
from jax.experimental import pallas as pl
from jax.experimental.pallas import tpu as pltpu


# -----------------------------------------------------------------------------
# Generation-aware hardware info (VMEM budget, #TensorCores, bf16 VPU support).
# -----------------------------------------------------------------------------
def _tpu_hw_info():
    vmem_cap = 64 << 20                       # conservative default (v7x minimum)
    try:
        vmem_cap = int(pltpu.get_tpu_info().vmem_capacity_bytes)
    except Exception:
        pass
    kind = ""
    try:
        kind = jax.devices()[0].device_kind.lower()
    except Exception:
        pass
    bf16_vpu = ("v6" in kind) or ("v7" in kind) or ("7x" in kind)     # not v5e
    two_tc = ("v4" in kind) or ("v5p" in kind) or ("v7" in kind) or ("7x" in kind)
    return vmem_cap, two_tc, bf16_vpu


def _choose_lane(G):
    # Prefer 512-1024 wide lane tiles; otherwise pad G up to a multiple of L.
    for cand in (1024, 512, 2048, 256, 128):
        if G % cand == 0:
            return cand
    return 512 if G >= 4096 else 128


def _sum_last2(v, acc_dtype=jnp.float32):
    # Lane reduce then sublane reduce, accumulating in f32, keepdims.
    s = jnp.sum(v, axis=v.ndim - 1, keepdims=True, dtype=acc_dtype)
    return jnp.sum(s, axis=v.ndim - 2, keepdims=True)


# -----------------------------------------------------------------------------
# Kernels
# -----------------------------------------------------------------------------
def _ln_single_pass_kernel(x_ref, o_ref, *, eps, inv_count, pad, center_dtype):
    """Normalize Nb whole groups held in one (Nb, R, L) block (1 read + 1 write)."""
    x = x_ref[...]
    mean = _sum_last2(x) * inv_count                         # (Nb,1,1) f32; pad zeros add 0
    xc = x.astype(center_dtype) - mean.astype(center_dtype)  # bf16 on v6e/v7x, f32 else
    var = _sum_last2(xc * xc) * inv_count                    # f32 accumulation
    if pad:                                                  # zero-pad elems added mean^2 each
        var = var - (pad * inv_count) * (mean * mean)
    var = jnp.maximum(var, 0.0)
    rstd = lax.rsqrt(var + eps)
    o_ref[...] = (xc * rstd.astype(center_dtype)).astype(o_ref.dtype)


def _ln_stats_kernel(x_ref, part_ref, k_ref, s1_ref, s2_ref, *,
                     inv_first_tile, center_dtype):
    """Tiled pass 1: per (group, chunk) shifted partial sums.

    Exports (S1 = sum(x-K), S2 = sum((x-K)^2), K) per chunk; the exact pad
    correction and Chan-style cross-chunk combine happen on tiny jnp arrays
    outside the kernel, avoiding E[x^2]-E[x]^2 cancellation.
    """
    t = pl.program_id(2)
    x = x_ref[...]                                           # (1, Rt, L)

    @pl.when(t == 0)
    def _():
        k0 = jnp.sum(x.astype(jnp.float32)) * inv_first_tile  # chunk shift K ~ mean
        k_ref[...] = jnp.full(k_ref.shape, k0, jnp.float32)
        s1_ref[...] = jnp.zeros_like(s1_ref)
        s2_ref[...] = jnp.zeros_like(s2_ref)

    xs = x.astype(center_dtype) - k_ref[...].astype(center_dtype)
    s1_ref[...] += jnp.sum(xs, axis=1, keepdims=True, dtype=jnp.float32)
    s2_ref[...] += jnp.sum(xs * xs, axis=1, keepdims=True, dtype=jnp.float32)

    @pl.when(t == pl.num_programs(2) - 1)
    def _():
        s1 = jnp.sum(s1_ref[...])
        s2 = jnp.sum(s2_ref[...])
        k = jnp.sum(k_ref[...]) * (1.0 / k_ref.shape[-1])
        part_ref[:, :, 0:1, :] = jnp.full((1, 1, 1, 128), s1, jnp.float32)
        part_ref[:, :, 1:2, :] = jnp.full((1, 1, 1, 128), s2, jnp.float32)
        part_ref[:, :, 2:3, :] = jnp.full((1, 1, 1, 128), k, jnp.float32)


def _ln_apply_kernel(x_ref, stats_ref, o_ref, *, center_dtype):
    """Tiled pass 2: y = x * rstd + bias (one FMA; rsqrt was done once per group)."""
    s = stats_ref[...]                                       # (1, 2, 128) f32
    rstd = s[:, 0:1, 0:1].astype(center_dtype)
    bias = s[:, 1:2, 0:1].astype(center_dtype)
    o_ref[...] = (x_ref[...].astype(center_dtype) * rstd + bias).astype(o_ref.dtype)


# -----------------------------------------------------------------------------
# Wrapper
# -----------------------------------------------------------------------------
def layer_norm3d(x, *, eps=1e-5, max_single_block_bytes=None, tile_bytes=None):
    """Pallas-TPU equivalent of `F.layer_norm(x, x.shape[-4:])` (no weight / bias)."""
    if x.ndim < 4:
        raise ValueError("LayerNorm3d expects an input with at least 4 dims")

    lead = x.shape[:-4]
    B = int(math.prod(lead)) if lead else 1                  # number of normalization groups
    G = int(math.prod(x.shape[-4:]))                         # elements per group
    itemsize = x.dtype.itemsize
    eps = float(eps)

    vmem_cap, two_tc, bf16_vpu = _tpu_hw_info()
    center_dtype = (jnp.bfloat16
                    if (x.dtype == jnp.bfloat16 and bf16_vpu) else jnp.float32)

    if max_single_block_bytes is None:
        # ~VMEM/10 leaves room for in/out double buffering + centered intermediates.
        max_single_block_bytes = max(2 << 20, min(16 << 20, vmem_cap // 10))
    vmem_limit = int(max(32 << 20, vmem_cap * 7 // 8))

    L = _choose_lane(G)                                      # lane-dense last dim (mult of 128)
    R = pl.cdiv(G, L)
    G_lpad = R * L                                           # lane-padded group size
    inv_count = 1.0 / float(G)
    per_group_bytes = G_lpad * itemsize

    # -------- small/medium groups: single pass, Nb whole groups per grid step --------
    if per_group_bytes <= max_single_block_bytes:
        x2 = x.reshape(B, G)
        if G_lpad != G:
            x2 = jnp.pad(x2, ((0, 0), (0, G_lpad - G)))      # zeros; variance corrected
        x3 = x2.reshape(B, R, L)

        nb = min(B, max(1, int(max_single_block_bytes // per_group_bytes)))
        if two_tc and B >= 2:
            nb = min(nb, (B + 1) // 2)                       # keep >= 2 programs (2 TCs)
        grid0 = pl.cdiv(B, nb)                               # ragged last block is safe

        out = pl.pallas_call(
            functools.partial(_ln_single_pass_kernel, eps=eps, inv_count=inv_count,
                              pad=G_lpad - G, center_dtype=center_dtype),
            out_shape=jax.ShapeDtypeStruct((B, R, L), x.dtype),
            grid_spec=pltpu.PrefetchScalarGridSpec(
                num_scalar_prefetch=0,
                grid=(grid0,),
                in_specs=[pl.BlockSpec((nb, R, L), lambda n: (n, 0, 0))],
                out_specs=pl.BlockSpec((nb, R, L), lambda n: (n, 0, 0))),
            compiler_params=pltpu.CompilerParams(
                dimension_semantics=("parallel",),
                vmem_limit_bytes=vmem_limit),
        )(x3)
        if G_lpad != G:
            out = out.reshape(B, G_lpad)[:, :G]
        return out.reshape(x.shape)

    # -------- large groups: tiled two-pass (stats pass + apply pass) --------
    if tile_bytes is None:
        tile_bytes = (4 << 20) if vmem_cap >= (100 << 20) else (2 << 20)

    C = 2 if B == 1 else 1                  # split a lone group over 2 parallel chunks (v7x)
    rt_target = max(8, int(tile_bytes) // (L * itemsize))
    T = max(C, pl.cdiv(R, rt_target))
    T = pl.cdiv(T, C) * C                   # multiple of C
    Rt = pl.cdiv(pl.cdiv(R, T), 8) * 8      # sublane dim multiple of 8
    R_pad = Rt * T
    Tc = T // C
    total_pad = R_pad * L - G               # zero padding at the tail of each group

    x2 = x.reshape(B, G)
    if total_pad:
        x2 = jnp.pad(x2, ((0, 0), (0, total_pad)))
    x3 = x2.reshape(B, R_pad, L)

    parts = pl.pallas_call(
        functools.partial(_ln_stats_kernel,
                          inv_first_tile=1.0 / float(Rt * L),
                          center_dtype=center_dtype),
        out_shape=jax.ShapeDtypeStruct((B, C, 3, 128), jnp.float32),
        grid_spec=pltpu.PrefetchScalarGridSpec(
            num_scalar_prefetch=0,
            grid=(B, C, Tc),                                 # reduction axis last, arbitrary
            in_specs=[pl.BlockSpec((1, Rt, L), lambda b, c, t: (b, c * Tc + t, 0))],
            out_specs=pl.BlockSpec((1, 1, 3, 128), lambda b, c, t: (b, c, 0, 0)),
            scratch_shapes=[pltpu.VMEM((1, 1, L), jnp.float32),
                            pltpu.VMEM((1, 1, L), jnp.float32),
                            pltpu.VMEM((1, 1, L), jnp.float32)]),
        compiler_params=pltpu.CompilerParams(
            dimension_semantics=("parallel", "parallel", "arbitrary"),
            vmem_limit_bytes=vmem_limit),
    )(x3)

    # Tiny host-side combine of the per-chunk shifted partials (exact pad correction,
    # cancellation-free since K_c ~ chunk mean).
    s1 = parts[:, :, 0, 0]                                   # (B, C)
    s2 = parts[:, :, 1, 0]
    kk = parts[:, :, 2, 0]
    chunk_elems = Tc * Rt * L
    real = [min(max(G - c * chunk_elems, 0), chunk_elems) for c in range(C)]
    padc = [chunk_elems - r for r in real]
    realv = jnp.asarray(real, jnp.float32)                   # (C,)
    padv = jnp.asarray(padc, jnp.float32)
    s1r = s1 + padv * kk                                     # remove pad (=0) contributions
    s2r = s2 - padv * kk * kk
    mean = jnp.sum(s1r + realv * kk, axis=1) / float(G)      # (B,)
    d = mean[:, None] - kk                                   # (B, C)
    m2 = jnp.sum(s2r - 2.0 * d * s1r + realv * d * d, axis=1)
    var = jnp.maximum(m2 / float(G), 0.0)
    rstd = lax.rsqrt(var + eps)
    bias = -mean * rstd
    stats = jnp.broadcast_to(
        jnp.stack([rstd, bias], axis=1)[:, :, None], (B, 2, 128)).astype(jnp.float32)

    out = pl.pallas_call(
        functools.partial(_ln_apply_kernel, center_dtype=center_dtype),
        out_shape=jax.ShapeDtypeStruct((B, R_pad, L), x.dtype),
        grid_spec=pltpu.PrefetchScalarGridSpec(
            num_scalar_prefetch=0,
            grid=(B, T),
            in_specs=[pl.BlockSpec((1, Rt, L), lambda b, t: (b, t, 0)),
                      pl.BlockSpec((1, 2, 128), lambda b, t: (b, 0, 0))],
            out_specs=pl.BlockSpec((1, Rt, L), lambda b, t: (b, t, 0))),
        compiler_params=pltpu.CompilerParams(
            dimension_semantics=("parallel", "parallel"),
            vmem_limit_bytes=vmem_limit),
    )(x3, stats)
    if total_pad:
        out = out.reshape(B, R_pad * L)[:, :G]
    return out.reshape(x.shape)


def layer_norm3d_ref(x, *, eps=1e-5):
    """Pure-JAX reference for F.layer_norm(x, x.shape[-4:])."""
    lead = x.shape[:-4]
    B = int(math.prod(lead)) if lead else 1
    xf = x.reshape(B, -1).astype(jnp.float32)
    mean = xf.mean(axis=1, keepdims=True)
    var = ((xf - mean) ** 2).mean(axis=1, keepdims=True)
    y = (xf - mean) * lax.rsqrt(var + eps)
    return y.reshape(x.shape).astype(x.dtype)


if __name__ == "__main__":
    key = jax.random.PRNGKey(0)
    ks = jax.random.split(key, 8)
    tol = dict(atol=1e-4, rtol=1e-4)

    def check(name, x, tolerance=None, **kw):
        o = jax.block_until_ready(layer_norm3d(x, **kw))
        r = layer_norm3d_ref(x)
        t = tolerance if tolerance is not None else tol
        ok = jnp.allclose(o.astype(jnp.float32), r.astype(jnp.float32), **t)
        assert o.shape == x.shape and bool(ok), f"mismatch: {name}"

    # 1) Canonical 5-D (N, C, D, H, W): per-sample norm over C*D*H*W (single-pass).
    check("single-pass", jax.random.normal(ks[0], (2, 4, 8, 16, 16), jnp.float32))

    # 2) Many small groups -> several whole groups batched per grid step.
    check("batched", jax.random.normal(ks[1], (8, 4, 2, 32, 32), jnp.float32))

    # 3) Forced tiled two-pass path (stats + apply), B = 2.
    check("tiled", jax.random.normal(ks[2], (2, 4, 16, 16, 16), jnp.float32),
          max_single_block_bytes=0, tile_bytes=32 * 1024)

    # 4) 4-D input: norm over the whole tensor (B = 1), single-pass.
    check("4d", jax.random.normal(ks[3], (4, 4, 16, 16), jnp.float32))

    # 5) Forced tiled path with B = 1 -> stats split into 2 parallel chunks
    #    (uses both TensorCores on v7x; identical numerics on 1-TC chips).
    check("tiled-B1", jax.random.normal(ks[4], (1, 4, 16, 16, 16), jnp.float32),
          max_single_block_bytes=0, tile_bytes=32 * 1024)

    # 6) B = 5 with a tight budget -> Nb = 2 does not divide B (ragged last block).
    check("ragged-Nb", jax.random.normal(ks[5], (5, 4, 2, 8, 8), jnp.float32),
          max_single_block_bytes=5000)

    # 7) Group size not a multiple of 128 -> lane padding + pad-corrected variance.
    check("lane-pad", jax.random.normal(ks[6], (2, 3, 5, 7, 6), jnp.float32))

    # 8) bf16 input: bf16 centering/normalize on v6e/v7x, f32 math on v5e.
    check("bf16", jax.random.normal(ks[7], (2, 4, 8, 16, 16)).astype(jnp.bfloat16),
          tolerance=dict(atol=5e-2, rtol=5e-2))

    print("KERNEL_OK")
</pallas_src>

<mosaic_0001>
module attributes {stable_mosaic.version = 11 : i64} {
  func.func @_ln_single_pass_kernel(%arg0: i32, %arg1: memref<2x8x1024xf32, #tpu.memory_space<vmem>>, %arg2: memref<2x8x1024xf32, #tpu.memory_space<vmem>>) attributes {dimension_semantics = [#tpu.dimension_semantics<parallel>], iteration_bounds = array<i64: 1>, scalar_prefetch = 0 : i64, scratch_operands = 0 : i64, tpu.core_type = #tpu.core_type<tc>, window_params = [{transform_indices = @transform_0, window_bounds = array<i64: 2, 8, 1024>}, {transform_indices = @transform_1, window_bounds = array<i64: 2, 8, 1024>}]} {
    %c0 = arith.constant 0 : index
    %c0_0 = arith.constant 0 : index
    %c0_1 = arith.constant 0 : index
    %0 = vector.load %arg1[%c0, %c0_0, %c0_1] : memref<2x8x1024xf32, #tpu.memory_space<vmem>>, vector<2x8x1024xf32>
    %cst = arith.constant dense<0.000000e+00> : vector<2x8xf32>
    %1 = vector.multi_reduction <add>, %0, %cst [2] : vector<2x8x1024xf32> to vector<2x8xf32>
    %2 = vector.shape_cast %1 : vector<2x8xf32> to vector<2x8x1xf32>
    %cst_2 = arith.constant dense<0.000000e+00> : vector<2x1xf32>
    %3 = vector.multi_reduction <add>, %2, %cst_2 [1] : vector<2x8x1xf32> to vector<2x1xf32>
    %4 = vector.shape_cast %3 : vector<2x1xf32> to vector<2x1x1xf32>
    %cst_3 = arith.constant 1.22070313E-4 : f32
    %5 = vector.broadcast %cst_3 : f32 to vector<2x1x1xf32>
    %6 = arith.mulf %4, %5 : vector<2x1x1xf32>
    %7 = vector.broadcast %6 : vector<2x1x1xf32> to vector<2x8x1024xf32>
    %8 = arith.subf %0, %7 : vector<2x8x1024xf32>
    %9 = arith.mulf %8, %8 : vector<2x8x1024xf32>
    %cst_4 = arith.constant dense<0.000000e+00> : vector<2x8xf32>
    %10 = vector.multi_reduction <add>, %9, %cst_4 [2] : vector<2x8x1024xf32> to vector<2x8xf32>
    %11 = vector.shape_cast %10 : vector<2x8xf32> to vector<2x8x1xf32>
    %cst_5 = arith.constant dense<0.000000e+00> : vector<2x1xf32>
    %12 = vector.multi_reduction <add>, %11, %cst_5 [1] : vector<2x8x1xf32> to vector<2x1xf32>
    %13 = vector.shape_cast %12 : vector<2x1xf32> to vector<2x1x1xf32>
    %cst_6 = arith.constant 1.22070313E-4 : f32
    %14 = vector.broadcast %cst_6 : f32 to vector<2x1x1xf32>
    %15 = arith.mulf %13, %14 : vector<2x1x1xf32>
    %cst_7 = arith.constant 0.000000e+00 : f32
    %16 = vector.broadcast %cst_7 : f32 to vector<2x1x1xf32>
    %17 = arith.maximumf %15, %16 : vector<2x1x1xf32>
    %cst_8 = arith.constant 9.99999974E-6 : f32
    %18 = vector.broadcast %cst_8 : f32 to vector<2x1x1xf32>
    %19 = arith.addf %17, %18 : vector<2x1x1xf32>
    %20 = math.rsqrt %19 : vector<2x1x1xf32>
    %21 = vector.broadcast %20 : vector<2x1x1xf32> to vector<2x8x1024xf32>
    %22 = arith.mulf %8, %21 : vector<2x8x1024xf32>
    %c0_9 = arith.constant 0 : index
    %c0_10 = arith.constant 0 : index
    %c0_11 = arith.constant 0 : index
    %23 = vector.load %arg2[%c0_9, %c0_10, %c0_11] : memref<2x8x1024xf32, #tpu.memory_space<vmem>>, vector<2x8x1024xf32>
    tpu.vector_store %arg2[%c0_9, %c0_10, %c0_11], %22 {strides = array<i32>} : memref<2x8x1024xf32, #tpu.memory_space<vmem>>, vector<2x8x1024xf32>,
    return
  }
  func.func @transform_0(%arg0: i32) -> (i32, i32, i32) {
    %c0_i32 = arith.constant 0 : i32
    %c0_i32_0 = arith.constant 0 : i32
    %c0_i32_1 = arith.constant 0 : i32
    return %arg0, %c0_i32, %c0_i32_0 : i32, i32, i32
  }
  func.func @transform_1(%arg0: i32) -> (i32, i32, i32) {
    %c0_i32 = arith.constant 0 : i32
    %c0_i32_0 = arith.constant 0 : i32
    %c0_i32_1 = arith.constant 0 : i32
    return %arg0, %c0_i32, %c0_i32_0 : i32, i32, i32
  }
}

</mosaic_0001>

<llo_original>
// kernel: tpu_custom_call.1
$region0: #{tpu_custom_call.1}
  #allocation0 [shape = 'u32[]', space=smem, size = 0x4, offset = 0x4, fixed_abs, tag = 'smem constant byte address 0x4 - core index']
  #allocation1 [shape = 'u32[144,128]{1,0:T(1,128)}', space=vmem, size = 0x12000, scoped, tag = 'internal scratch']
  %s0 = inlined_call_operand.hbm [shape: f32[2,8,1024], index: 0, kind: input, shape index: {}]
  %s1 = inlined_call_operand.hbm [shape: f32[2,8,1024], index: 1, kind: output, shape index: {}]
  %s2 = sld [smem:[#allocation0]]
  $region18: #{tpu_custom_call.1} parent=0
    _
  %s4 = ssub.s32 1, %s2
  %s5 = scalar_select 0, %s4, %s2
  $region1: #{tpu_custom_call.1} parent=0
    #allocation2 [shape = 'u8[65536]{0}', space=vmem, size = 0x10000, scoped, tag = 'input window, operand 0, single buffered']
    #allocation3 [shape = 's32[1]{0}', space=sflag, size = 0x4, scoped, tag = 'scoped memory for tpu_custom_call.1']
    #allocation4 [shape = 's32[1]{0}', space=sflag, size = 0x4, scoped, tag = 'scoped memory for tpu_custom_call.1']
    #allocation5 [shape = 'u8[65536]{0}', space=vmem, size = 0x10000, scoped, tag = 'output window, operand 0, single buffered']
    %6 = vsyncpa [#allocation3], 0
    %7 = vsyncpa [#allocation4], 0
    // Predicated region
    $region2: #{tpu_custom_call.1} parent=1 // pred_check
      _
    $region3: #{tpu_custom_call.1} parent=1 // pred_check_branch
      %9 = sbr.rel (0) target = $region5
    $region4: #{tpu_custom_call.1} parent=1 // pred_region
      %s11 = ssub.s32 2048, 2048
      %12 = vsyncadd [#allocation3], %s11
      %s13 = sshll.u32 [#allocation2], 4
      %s14 = int_to_ptr.vmem [resolvable:$true] %s13
      %19 = dma.hbm_to_vmem [thread:$0]  %s0, 2048, %s14, [#allocation3], 1024, 1024, 64
    $region5: #{tpu_custom_call.1} parent=1 // pred_fallthru
      _
    // Predicated region
    $region6: #{tpu_custom_call.1} parent=1 // pred_check
      _
    $region7: #{tpu_custom_call.1} parent=1 // pred_check_branch
      %21 = sbr.rel (0) target = $region9
    $region8: #{tpu_custom_call.1} parent=1 // pred_region
      %22 = dma.done [#allocation3], 2048
    $region9: #{tpu_custom_call.1} parent=1 // pred_fallthru
      _
    %v23 = vld [vmem:[#allocation2] sm:$0xff]
    %v24 = vld [vmem:[#allocation2 + $0x8] sm:$0xff]
    %v25 = vld [vmem:[#allocation2 + $0x10] sm:$0xff]
    %v26 = vld [vmem:[#allocation2 + $0x18] sm:$0xff]
    %v27 = vld [vmem:[#allocation2 + $0x20] sm:$0xff]
    %v28 = vld [vmem:[#allocation2 + $0x28] sm:$0xff]
    %v29 = vld [vmem:[#allocation2 + $0x30] sm:$0xff]
    %v30 = vld [vmem:[#allocation2 + $0x38] sm:$0xff]
    %v31 = vld [vmem:[#allocation2 + $0x40] sm:$0xff]
    %v32 = vld [vmem:[#allocation2 + $0x48] sm:$0xff]
    %v33 = vld [vmem:[#allocation2 + $0x50] sm:$0xff]
    %v34 = vld [vmem:[#allocation2 + $0x58] sm:$0xff]
    %v35 = vld [vmem:[#allocation2 + $0x60] sm:$0xff]
    %v36 = vld [vmem:[#allocation2 + $0x68] sm:$0xff]
    %v37 = vld [vmem:[#allocation2 + $0x70] sm:$0xff]
    %v38 = vld [vmem:[#allocation2 + $0x78] sm:$0xff]
    %v39 = vadd.f32 %v23, %v24
    %v40 = vadd.f32 %v39, %v25
    %v41 = vadd.f32 %v40, %v26
    %v42 = vadd.f32 %v41, %v27
    %v43 = vadd.f32 %v42, %v28
    %v44 = vadd.f32 %v43, %v29
    %v45 = vadd.f32 %v44, %v30
    %46 = vadd.xlane.f32.xlu0 %v45
    %v47 = vpop.xlane.xlu0 %46
    %v48 = vadd.f32 %v31, %v32
    %v49 = vadd.f32 %v48, %v33
    %v50 = vadd.f32 %v49, %v34
    %v51 = vadd.f32 %v50, %v35
    %v52 = vadd.f32 %v51, %v36
    %v53 = vadd.f32 %v52, %v37
    %v54 = vadd.f32 %v53, %v38
    %55 = vadd.xlane.f32.xlu0 %v54
    %v56 = vpop.xlane.xlu0 %55
    %v57 = vrot.slane %v47, 4
    %v58 = vadd.f32 %v47, %v57
    %v59 = vrot.slane %v58, 2
    %v60 = vadd.f32 %v58, %v59
    %v61 = vrot.slane %v60, 1
    %v62 = vadd.f32 %v60, %v61
    %v63 = vrot.slane %v56, 4
    %v64 = vadd.f32 %v56, %v63
    %v65 = vrot.slane %v64, 2
    %v66 = vadd.f32 %v64, %v65
    %v67 = vrot.slane %v66, 1
    %v68 = vadd.f32 %v66, %v67
    %v69 = vmul.f32 %v62, 0.00012207031
    %v70 = vmul.f32 %v68, 0.00012207031
    %v71 = vsub.f32 %v23, %v69
    %v72 = vsub.f32 %v24, %v69
    %v73 = vsub.f32 %v25, %v69
    %v74 = vsub.f32 %v26, %v69
    %v75 = vsub.f32 %v27, %v69
    %v76 = vsub.f32 %v28, %v69
    %v77 = vsub.f32 %v29, %v69
    %v78 = vsub.f32 %v30, %v69
    %v79 = vsub.f32 %v31, %v70
    %v80 = vsub.f32 %v32, %v70
    %v81 = vsub.f32 %v33, %v70
    %v82 = vsub.f32 %v34, %v70
    %v83 = vsub.f32 %v35, %v70
    %v84 = vsub.f32 %v36, %v70
    %v85 = vsub.f32 %v37, %v70
    %v86 = vsub.f32 %v38, %v70
    %v87 = vmul.f32 %v71, %v71
    %v88 = vmul.f32 %v72, %v72
    %v89 = vmul.f32 %v73, %v73
    %v90 = vmul.f32 %v74, %v74
    %v91 = vmul.f32 %v75, %v75
    %v92 = vmul.f32 %v76, %v76
    %v93 = vmul.f32 %v77, %v77
    %v94 = vmul.f32 %v78, %v78
    %v95 = vmul.f32 %v79, %v79
    %v96 = vmul.f32 %v80, %v80
    %v97 = vmul.f32 %v81, %v81
    %v98 = vmul.f32 %v82, %v82
    %v99 = vmul.f32 %v83, %v83
    %v100 = vmul.f32 %v84, %v84
    %v101 = vmul.f32 %v85, %v85
    %v102 = vmul.f32 %v86, %v86
    %v103 = vadd.f32 %v87, %v88
    %v104 = vadd.f32 %v103, %v89
    %v105 = vadd.f32 %v104, %v90
    %v106 = vadd.f32 %v105, %v91
    %v107 = vadd.f32 %v106, %v92
    %v108 = vadd.f32 %v107, %v93
    %v109 = vadd.f32 %v108, %v94
    %110 = vadd.xlane.f32.xlu0 %v109
    %v111 = vpop.xlane.xlu0 %110
    %v112 = vadd.f32 %v95, %v96
    %v113 = vadd.f32 %v112, %v97
    %v114 = vadd.f32 %v113, %v98
    %v115 = vadd.f32 %v114, %v99
    %v116 = vadd.f32 %v115, %v100
    %v117 = vadd.f32 %v116, %v101
    %v118 = vadd.f32 %v117, %v102
    %119 = vadd.xlane.f32.xlu0 %v118
    %v120 = vpop.xlane.xlu0 %119
    %v121 = vrot.slane %v111, 4
    %v122 = vadd.f32 %v111, %v121
    %v123 = vrot.slane %v122, 2
    %v124 = vadd.f32 %v122, %v123
    %v125 = vrot.slane %v124, 1
    %v126 = vadd.f32 %v124, %v125
    %v127 = vrot.slane %v120, 4
    %v128 = vadd.f32 %v120, %v127
    %v129 = vrot.slane %v128, 2
    %v130 = vadd.f32 %v128, %v129
    %v131 = vrot.slane %v130, 1
    %v132 = vadd.f32 %v130, %v131
    %v133 = vmul.f32 %v126, 0.00012207031
    %v134 = vmul.f32 %v132, 0.00012207031
    %v135 = vmax.f32 %v133, 0.0
    %v136 = vmax.f32 %v134, 0.0
    %v137 = vadd.f32 %v135, 1e-05
    %v138 = vadd.f32 %v136, 1e-05
    %v139 = vrsqrt.pop %v137
    %v140 = vrsqrt.pop %v138
    %v141 = vmul.f32 %v71, %v139
    %v142 = vmul.f32 %v72, %v139
    %v143 = vmul.f32 %v73, %v139
    %v144 = vmul.f32 %v74, %v139
    %v145 = vmul.f32 %v75, %v139
    %v146 = vmul.f32 %v76, %v139
    %v147 = vmul.f32 %v77, %v139
    %v148 = vmul.f32 %v78, %v139
    %v149 = vmul.f32 %v79, %v140
    %v150 = vmul.f32 %v80, %v140
    %v151 = vmul.f32 %v81, %v140
    %v152 = vmul.f32 %v82, %v140
    %v153 = vmul.f32 %v83, %v140
    %v154 = vmul.f32 %v84, %v140
    %v155 = vmul.f32 %v85, %v140
    %v156 = vmul.f32 %v86, %v140
    %157 = vst [vmem:[#allocation5] sm:$0xff] %v141
    %158 = vst [vmem:[#allocation5 + $0x8] sm:$0xff] %v142
    %159 = vst [vmem:[#allocation5 + $0x10] sm:$0xff] %v143
    %160 = vst [vmem:[#allocation5 + $0x18] sm:$0xff] %v144
    %161 = vst [vmem:[#allocation5 + $0x20] sm:$0xff] %v145
    %162 = vst [vmem:[#allocation5 + $0x28] sm:$0xff] %v146
    %163 = vst [vmem:[#allocation5 + $0x30] sm:$0xff] %v147
    %164 = vst [vmem:[#allocation5 + $0x38] sm:$0xff] %v148
    %165 = vst [vmem:[#allocation5 + $0x40] sm:$0xff] %v149
    %166 = vst [vmem:[#allocation5 + $0x48] sm:$0xff] %v150
    %167 = vst [vmem:[#allocation5 + $0x50] sm:$0xff] %v151
    %168 = vst [vmem:[#allocation5 + $0x58] sm:$0xff] %v152
    %169 = vst [vmem:[#allocation5 + $0x60] sm:$0xff] %v153
    %170 = vst [vmem:[#allocation5 + $0x68] sm:$0xff] %v154
    %171 = vst [vmem:[#allocation5 + $0x70] sm:$0xff] %v155
    %172 = vst [vmem:[#allocation5 + $0x78] sm:$0xff] %v156
    // Predicated region
    $region10: #{tpu_custom_call.1} parent=1 // pred_check
      _
    $region11: #{tpu_custom_call.1} parent=1 // pred_check_branch
      %174 = sbr.rel (0) target = $region13
    $region12: #{tpu_custom_call.1} parent=1 // pred_region
      %s176 = ssub.s32 2048, 2048
      %177 = vsyncadd [#allocation4], %s176
      %s178 = sshll.u32 [#allocation5], 4
      %s179 = int_to_ptr.vmem [resolvable:$true] %s178
      %184 = dma.vmem_to_hbm [thread:$0]  %s179, 2048, %s1, [#allocation4], 1024, 1024, 64
    $region13: #{tpu_custom_call.1} parent=1 // pred_fallthru
      _
    // Predicated region
    $region14: #{tpu_custom_call.1} parent=1 // pred_check
      _
    $region15: #{tpu_custom_call.1} parent=1 // pred_check_branch
      %186 = sbr.rel (0) target = $region17
    $region16: #{tpu_custom_call.1} parent=1 // pred_region
      %187 = dma.done [#allocation4], 2048
    $region17: #{tpu_custom_call.1} parent=1 // pred_fallthru
      _
    %188 = vsyncpa [#allocation3], 1
    %189 = vsyncpa [#allocation4], 1

</llo_original>
